<compile_context>
chip_gen: v5e
topology: v5e:2x2
jax: 0.10.0
libtpu: 0.0.40
codegen_flags: <defaults>
</compile_context>

<pallas_src>
import functools

import jax
import jax.numpy as jnp
from jax.experimental import pallas as pl
from jax.experimental.pallas import tpu as pltpu


def _round_up(x, m):
    return ((x + m - 1) // m) * m


def _vmem_capacity_bytes(default=64 * 1024 * 1024):
    """Per-core VMEM capacity; conservative (v7x-sized) fallback if unknown."""
    try:
        info = pltpu.get_tpu_info()
        return int(getattr(info, "vmem_capacity_bytes", default))
    except Exception:
        return default


def edge_decoder_kernel(xa_ref, xb_ref, w1_ref, b1_ref, w2_ref, b2_ref,
                        out_ref, *, apply_sigmoid):
    # x = z_cat[edge0] * z_cat[edge1]  (tile_e, D).  Streams may be bf16;
    # upcast so all arithmetic stays f32 (only the table entries are rounded).
    x = xa_ref[...].astype(jnp.float32) * xb_ref[...].astype(jnp.float32)

    # TODO(synk): nn.Dropout is a no-op in eval mode; training-mode dropout
    # (random masking) is intentionally not applied here.

    # Layer 1: Linear + ReLU on the MXU (M=tile_e, K=D, N=H).
    h = jnp.dot(x, w1_ref[...], preferred_element_type=jnp.float32) + b1_ref[...]
    h = jnp.maximum(h, 0.0)

    # Layer 2 (out_channels == 1): contract H directly into a lane-dense
    # (1, tile_e) row, o = w2_row . h^T.  This keeps bias/sigmoid/stores on
    # vregs with 128 valid lanes and the output store unmasked/contiguous,
    # instead of the old lane-sparse (tile_e, 1) column epilogue.
    o = jax.lax.dot_general(
        w2_ref[...], h,
        dimension_numbers=(((1,), (1,)), ((), ())),
        preferred_element_type=jnp.float32)              # (1, tile_e)
    o = o + b2_ref[...]                                  # (1,1) lane-broadcast
    if apply_sigmoid:
        o = jax.nn.sigmoid(o)
    out_ref[...] = o


def edge_decoder_forward(z, z2, edge, params, *, sigmoid=True,
                         stream_dtype=jnp.bfloat16, max_tile_e=4096,
                         stream_buffers=2):
    """Pallas implementation of EdgeDecoder.forward (num_layers=2, eval mode)."""
    w1, b1, w2, b2 = params  # w1:(D1+D2,H)  b1:(1,H)  w2:(H,1)  b2:(1,1)

    # One-time concat of the two node-embedding tables -> one gather per edge
    # endpoint and no in-kernel lane concat.
    z_cat = jnp.concatenate([z, z2], axis=1)            # (N, D1 + D2)
    D = z_cat.shape[1]
    H = w1.shape[1]
    E = edge.shape[1]

    # --- VMEM-budget-aware tile sizing (per-generation) -------------------
    vmem_cap = _vmem_capacity_bytes()
    budget = min(max(vmem_cap // 4, 8 << 20), 24 << 20)  # ~16 MiB on v7x, 24 MiB on v5e/v6e

    itemsize = jnp.dtype(stream_dtype).itemsize
    d_pad = _round_up(D, 128)                            # lane padding inside VMEM tiles
    # 2 endpoint streams x N buffers, plus the (sublane-padded) output row x2.
    bytes_per_edge = 2 * stream_buffers * d_pad * itemsize + 2 * 8 * 4
    fixed_bytes = (_round_up(D, 8) * _round_up(H, 128)
                   + 2 * _round_up(H, 128) + 128) * 4    # resident weights/biases
    tile_e = max((budget - fixed_bytes) // bytes_per_edge, 128)
    tile_e = min(tile_e, max_tile_e)
    # Keep >= ~4 grid steps when the edge count allows (megacore split on v7x,
    # and enough steps to hide the per-step overhead / pipeline ramp).
    tile_e = min(tile_e, max(128, _round_up(pl.cdiv(E, 4), 128)))
    tile_e = max(128, (tile_e // 128) * 128)             # lane-dense output blocks

    E_pad = _round_up(E, tile_e)
    if E_pad != E:
        # Pad the edge list (index 0 is a valid node); padded rows compute
        # garbage that is sliced off below.
        edge = jnp.pad(edge, ((0, 0), (0, E_pad - E)))

    # Endpoint gathers stay in plain JAX (efficient XLA row gather); bf16
    # streams halve the HBM traffic of the gather-write + kernel-read path.
    z_cat = z_cat.astype(stream_dtype)
    xa = z_cat[edge[0]]                                  # (E_pad, D) stream_dtype
    xb = z_cat[edge[1]]                                  # (E_pad, D) stream_dtype

    w1 = w1.astype(jnp.float32)
    b1 = b1.reshape(1, H).astype(jnp.float32)
    w2_row = w2.reshape(1, H).astype(jnp.float32)        # (1, H) for the H-contraction
    b2 = b2.reshape(1, 1).astype(jnp.float32)

    grid = (E_pad // tile_e,)
    if stream_buffers == 2:
        edge_spec = pl.BlockSpec((tile_e, D), lambda i: (i, 0))
    else:
        edge_spec = pl.BlockSpec((tile_e, D), lambda i: (i, 0),
                                 pipeline_mode=pl.Buffered(stream_buffers))
    full = lambda a: pl.BlockSpec(a.shape, lambda i: (0, 0))

    # Advisory cost estimate so XLA overlaps the upstream gather with the kernel.
    flops = int(E_pad * D + 2 * E_pad * D * H + 2 * E_pad * H)
    bytes_accessed = int(2 * E_pad * D * itemsize + E_pad * 4
                         + (D * H + 2 * H + 1) * 4)
    cost = pl.CostEstimate(flops=flops,
                           transcendentals=int(E_pad) if sigmoid else 0,
                           bytes_accessed=bytes_accessed)

    vmem_limit = int(min(budget + (8 << 20), vmem_cap // 2))

    out_row = pl.pallas_call(
        functools.partial(edge_decoder_kernel, apply_sigmoid=sigmoid),
        out_shape=jax.ShapeDtypeStruct((1, E_pad), jnp.float32),
        grid_spec=pltpu.PrefetchScalarGridSpec(
            num_scalar_prefetch=0,
            grid=grid,
            in_specs=[
                edge_spec, edge_spec,                    # xa, xb
                full(w1), full(b1),                      # layer 1
                full(w2_row), full(b2),                  # layer 2
            ],
            out_specs=pl.BlockSpec((1, tile_e), lambda i: (0, i)),
        ),
        compiler_params=pltpu.CompilerParams(
            dimension_semantics=("parallel",),
            vmem_limit_bytes=vmem_limit),
        cost_estimate=cost,
    )(xa, xb, w1, b1, w2_row, b2)

    return out_row.reshape(E_pad, 1)[:E]                 # (E, 1)


def init_params(key, in_channels, hidden_channels, out_channels=1):
    """Deterministic init mimicking torch.nn.Linear defaults (uniform +/- 1/sqrt(fan_in))."""
    k1, k2, k3, k4 = jax.random.split(key, 4)
    bound1 = 1.0 / jnp.sqrt(in_channels)
    bound2 = 1.0 / jnp.sqrt(hidden_channels)
    w1 = jax.random.uniform(k1, (in_channels, hidden_channels), jnp.float32,
                            -bound1, bound1)
    b1 = jax.random.uniform(k2, (1, hidden_channels), jnp.float32, -bound1, bound1)
    w2 = jax.random.uniform(k3, (hidden_channels, out_channels), jnp.float32,
                            -bound2, bound2)
    b2 = jax.random.uniform(k4, (1, out_channels), jnp.float32, -bound2, bound2)
    return w1, b1, w2, b2


def reference_forward(z, z2, edge, params, sigmoid=True):
    """Pure-JAX mirror of the PyTorch module (f32, eval mode)."""
    w1, b1, w2, b2 = params
    x = z[edge[0]] * z[edge[1]]
    x2 = z2[edge[0]] * z2[edge[1]]
    x = jnp.concatenate([x, x2], axis=1)
    h = jnp.maximum(jnp.dot(x, w1) + b1, 0.0)
    o = jnp.dot(h, w2) + b2
    return jax.nn.sigmoid(o) if sigmoid else o


if __name__ == "__main__":
    key = jax.random.PRNGKey(0)
    k_z, k_z2, k_e, k_p = jax.random.split(key, 4)

    N = 128         # number of nodes
    D1 = 16         # dim of z
    D2 = 16         # dim of z2
    H = 32          # hidden_channels
    E = 2000        # number of edges (not a tile multiple -> exercises padding)
    in_channels = D1 + D2

    z = jax.random.normal(k_z, (N, D1), jnp.float32)
    z2 = jax.random.normal(k_z2, (N, D2), jnp.float32)
    edge = jax.random.randint(k_e, (2, E), 0, N, jnp.int32)

    params = init_params(k_p, in_channels, H, out_channels=1)

    ref = reference_forward(z, z2, edge, params, sigmoid=True)
    ref_logits = reference_forward(z, z2, edge, params, sigmoid=False)

    # 1) f32 streams: tight check of the kernel math vs. the reference.
    out_f32 = jax.block_until_ready(
        edge_decoder_forward(z, z2, edge, params, sigmoid=True,
                             stream_dtype=jnp.float32))
    assert out_f32.shape == (E, 1)
    assert jnp.allclose(out_f32, ref, atol=1e-4, rtol=1e-4), \
        "mismatch vs reference (f32 streams, sigmoid)"

    logits_f32 = jax.block_until_ready(
        edge_decoder_forward(z, z2, edge, params, sigmoid=False,
                             stream_dtype=jnp.float32))
    assert jnp.allclose(logits_f32, ref_logits, atol=1e-4, rtol=1e-4), \
        "mismatch vs reference (f32 streams, logits)"

    # 2) default bf16 streams: halved HBM traffic, bf16-rounded table entries
    #    -> relaxed tolerance (arithmetic is still f32 inside the kernel).
    out_bf16 = jax.block_until_ready(
        edge_decoder_forward(z, z2, edge, params, sigmoid=True))
    assert out_bf16.shape == (E, 1)
    assert jnp.allclose(out_bf16, ref, atol=5e-2, rtol=5e-2), \
        "mismatch vs reference (bf16 streams, sigmoid)"

    print("KERNEL_OK")
</pallas_src>

<mosaic_0001>
module attributes {stable_mosaic.version = 11 : i64} {
  func.func @edge_decoder_kernel(%arg0: i32, %arg1: memref<512x32xf32, #tpu.memory_space<vmem>>, %arg2: memref<512x32xf32, #tpu.memory_space<vmem>>, %arg3: memref<32x32xf32, #tpu.memory_space<vmem>>, %arg4: memref<1x32xf32, #tpu.memory_space<vmem>>, %arg5: memref<1x32xf32, #tpu.memory_space<vmem>>, %arg6: memref<1x1xf32, #tpu.memory_space<vmem>>, %arg7: memref<1x512xf32, #tpu.memory_space<vmem>>) attributes {dimension_semantics = [#tpu.dimension_semantics<parallel>], iteration_bounds = array<i64: 4>, scalar_prefetch = 0 : i64, scratch_operands = 0 : i64, tpu.core_type = #tpu.core_type<tc>, window_params = [{transform_indices = @transform_0, window_bounds = array<i64: 512, 32>}, {transform_indices = @transform_1, window_bounds = array<i64: 512, 32>}, {pipeline_mode = #tpu.pipeline_mode<synchronous>, transform_indices = @transform_2, window_bounds = array<i64: 32, 32>}, {pipeline_mode = #tpu.pipeline_mode<synchronous>, transform_indices = @transform_3, window_bounds = array<i64: 1, 32>}, {pipeline_mode = #tpu.pipeline_mode<synchronous>, transform_indices = @transform_4, window_bounds = array<i64: 1, 32>}, {pipeline_mode = #tpu.pipeline_mode<synchronous>, transform_indices = @transform_5, window_bounds = array<i64: 1, 1>}, {transform_indices = @transform_6, window_bounds = array<i64: 1, 512>}]} {
    %c0 = arith.constant 0 : index
    %c0_0 = arith.constant 0 : index
    %0 = vector.load %arg1[%c0, %c0_0] : memref<512x32xf32, #tpu.memory_space<vmem>>, vector<512x32xf32>
    %c0_1 = arith.constant 0 : index
    %c0_2 = arith.constant 0 : index
    %1 = vector.load %arg2[%c0_1, %c0_2] : memref<512x32xf32, #tpu.memory_space<vmem>>, vector<512x32xf32>
    %2 = arith.mulf %0, %1 : vector<512x32xf32>
    %c0_3 = arith.constant 0 : index
    %c0_4 = arith.constant 0 : index
    %3 = vector.load %arg3[%c0_3, %c0_4] : memref<32x32xf32, #tpu.memory_space<vmem>>, vector<32x32xf32>
    %cst = arith.constant dense<0.000000e+00> : vector<512x32xf32>
    %4 = tpu.matmul %2, %3, %cst {dimension_numbers = #tpu.dot_dimension_numbers<[1], [0], [0], [1], [0, 0, 1, 1], [], []>} : vector<512x32xf32>, vector<32x32xf32>, vector<512x32xf32> -> vector<512x32xf32>
    %c0_5 = arith.constant 0 : index
    %c0_6 = arith.constant 0 : index
    %5 = vector.load %arg4[%c0_5, %c0_6] : memref<1x32xf32, #tpu.memory_space<vmem>>, vector<1x32xf32>
    %6 = vector.broadcast %5 : vector<1x32xf32> to vector<512x32xf32>
    %7 = arith.addf %4, %6 : vector<512x32xf32>
    %cst_7 = arith.constant 0.000000e+00 : f32
    %8 = vector.broadcast %cst_7 : f32 to vector<512x32xf32>
    %9 = arith.maximumf %7, %8 : vector<512x32xf32>
    %c0_8 = arith.constant 0 : index
    %c0_9 = arith.constant 0 : index
    %10 = vector.load %arg5[%c0_8, %c0_9] : memref<1x32xf32, #tpu.memory_space<vmem>>, vector<1x32xf32>
    %cst_10 = arith.constant dense<0.000000e+00> : vector<1x512xf32>
    %11 = tpu.matmul %10, %9, %cst_10 {dimension_numbers = #tpu.dot_dimension_numbers<[1], [1], [0], [0], [0, 0, 1, 0], [], []>} : vector<1x32xf32>, vector<512x32xf32>, vector<1x512xf32> -> vector<1x512xf32>
    %c0_11 = arith.constant 0 : index
    %c0_12 = arith.constant 0 : index
    %12 = vector.load %arg6[%c0_11, %c0_12] : memref<1x1xf32, #tpu.memory_space<vmem>>, vector<1x1xf32>
    %13 = vector.broadcast %12 : vector<1x1xf32> to vector<1x512xf32>
    %14 = arith.addf %11, %13 : vector<1x512xf32>
    %15 = arith.negf %14 : vector<1x512xf32>
    %16 = math.exp %15 : vector<1x512xf32>
    %cst_13 = arith.constant 1.000000e+00 : f32
    %17 = vector.broadcast %cst_13 : f32 to vector<1x512xf32>
    %18 = arith.addf %17, %16 : vector<1x512xf32>
    %19 = arith.divf %17, %18 : vector<1x512xf32>
    %c0_14 = arith.constant 0 : index
    %c0_15 = arith.constant 0 : index
    %20 = vector.load %arg7[%c0_14, %c0_15] : memref<1x512xf32, #tpu.memory_space<vmem>>, vector<1x512xf32>
    tpu.vector_store %arg7[%c0_14, %c0_15], %19 {strides = array<i32>} : memref<1x512xf32, #tpu.memory_space<vmem>>, vector<1x512xf32>,
    return
  }
  func.func @transform_0(%arg0: i32) -> (i32, i32) {
    %c0_i32 = arith.constant 0 : i32
    %c0_i32_0 = arith.constant 0 : i32
    return %arg0, %c0_i32 : i32, i32
  }
  func.func @transform_1(%arg0: i32) -> (i32, i32) {
    %c0_i32 = arith.constant 0 : i32
    %c0_i32_0 = arith.constant 0 : i32
    return %arg0, %c0_i32 : i32, i32
  }
  func.func @transform_2(%arg0: i32) -> (i32, i32) {
    %c0_i32 = arith.constant 0 : i32
    %c0_i32_0 = arith.constant 0 : i32
    %c0_i32_1 = arith.constant 0 : i32
    return %c0_i32, %c0_i32_0 : i32, i32
  }
  func.func @transform_3(%arg0: i32) -> (i32, i32) {
    %c0_i32 = arith.constant 0 : i32
    %c0_i32_0 = arith.constant 0 : i32
    %c0_i32_1 = arith.constant 0 : i32
    return %c0_i32, %c0_i32_0 : i32, i32
  }
  func.func @transform_4(%arg0: i32) -> (i32, i32) {
    %c0_i32 = arith.constant 0 : i32
    %c0_i32_0 = arith.constant 0 : i32
    %c0_i32_1 = arith.constant 0 : i32
    return %c0_i32, %c0_i32_0 : i32, i32
  }
  func.func @transform_5(%arg0: i32) -> (i32, i32) {
    %c0_i32 = arith.constant 0 : i32
    %c0_i32_0 = arith.constant 0 : i32
    %c0_i32_1 = arith.constant 0 : i32
    return %c0_i32, %c0_i32_0 : i32, i32
  }
  func.func @transform_6(%arg0: i32) -> (i32, i32) {
    %c0_i32 = arith.constant 0 : i32
    %c0_i32_0 = arith.constant 0 : i32
    return %c0_i32, %arg0 : i32, i32
  }
}

</mosaic_0001>

<llo_original>
// kernel: tpu_custom_call.1
$region0: #{tpu_custom_call.1}
  #allocation0 [shape = 'u32[]', space=smem, size = 0x4, offset = 0x4, fixed_abs, tag = 'smem constant byte address 0x4 - core index']
  #allocation1 [shape = 'u32[72,128]{1,0:T(1,128)}', space=vmem, size = 0x9000, scoped, tag = 'internal scratch']
  #allocation2 [shape = 'f32[1,1]{1,0:T(1,128)S(1)}', space=vmem, size = 0x200, scoped, tag = 'scoped memory for tpu_custom_call.1']
  %s0 = inlined_call_operand.vmem [shape: f32[2048,32], index: 0, kind: input, shape index: {}]
  %s1 = inlined_call_operand.vmem [shape: f32[2048,32], index: 1, kind: input, shape index: {}]
  %s2 = inlined_call_operand.vmem [shape: f32[32,32], index: 2, kind: input, shape index: {}]
  %s3 = inlined_call_operand.vmem [shape: f32[1,32], index: 3, kind: input, shape index: {}]
  %s4 = inlined_call_operand.vmem [shape: f32[1,32], index: 4, kind: input, shape index: {}]
  %s5 = inlined_call_operand.<no memory space> [shape: f32[1,1], index: 5, kind: input, shape index: {}]
  %s6 = inlined_call_operand.hbm [shape: f32[1,2048], index: 6, kind: output, shape index: {}]
  %s7 = sld [smem:[#allocation0]]
  $region57: #{tpu_custom_call.1} parent=0
    _
  %s9 = ssub.s32 1, %s7
  %s10 = scalar_select 0, %s9, %s7
  %v11 = vstv %s5
  %12 = vst [vmem:[#allocation2] sm:$0x1] %v11
  $region1: #{tpu_custom_call.1} parent=0
    #allocation3 [shape = 'u8[4096]{0}', space=vmem, size = 0x1000, scoped, tag = 'output window, operand 0']
    #allocation4 [shape = 's32[2]{0}', space=sflag, size = 0x8, scoped, tag = 'scoped memory for tpu_custom_call.1']
    %13 = vsyncpa [#allocation4], 0
    %s14 = scalar_lea.sflag [#allocation4], 1
    %15 = vsyncpa %s14, 0
    loop: start=0, step=1, limit=6
    $region2: #{tpu_custom_call.1} parent=1 // loop_pre_header
      _
    $region3: #{tpu_custom_call.1} parent=1 // loop_header
      %s17 = sphi 0, %s21
      %p18 = scmp.ge.s32.totalorder %s17, 6
      %s27 = sphi 0, %s29
      %s30 = sphi 0, %s27
      %s31 = sphi 0, %s30
      %s47 = sphi 0, %s31
      %s53 = sphi 0, %s55
      %s56 = sphi 0, %s53
      %s57 = sphi 0, %s56
      %s73 = sphi 0, %s57
      %s77 = sphi 0, %s77
      %s79 = sphi 0, %s77
      %s80 = sphi 0, %s79
      %s94 = sphi 0, %s80
      %s98 = sphi 0, %s98
      %s100 = sphi 0, %s98
      %s101 = sphi 0, %s100
      %s115 = sphi 0, %s101
      %s119 = sphi 0, %s119
      %s121 = sphi 0, %s119
      %s122 = sphi 0, %s121
      %s136 = sphi 0, %s122
      %s140 = sphi 0, %s140
      %s142 = sphi 0, %s140
      %s143 = sphi 0, %s142
      %s157 = sphi 0, %s143
      %s163 = sphi 0, %s165
      %s166 = sphi 0, %s163
      %s167 = sphi 0, %s166
      %s183 = sphi 0, %s167
    $region4: #{tpu_custom_call.1} parent=1 // loop_header_branch
      %20 = sbr.rel (%p18) target = $region8
    $region5: #{tpu_custom_call.1} parent=1 // loop_body
      %s22 = ssub.s32 %s17, 1
      %s23 = ssub.s32 %s17, 2
      %s24 = sadd.s32 %s17, 1
      %s25 = ssub.s32 %s17, %s24
      %p26 = scmp.eq.s32.totalorder %s25, 0
      %s28 = sadd.s32 %s27, 1
      %s29 = scalar_select %p26, %s27, %s28
      %p32 = pneg %p26
      %p33 = scmp.eq.s32.totalorder %s17, 3
      %p34 = por %p32, %p33
      %p35 = scmp.ne.s32.totalorder %s27, %s30
      %p36 = scmp.eq.s32.totalorder %s17, 0
      %p37 = por %p35, %p36
      %p38 = scmp.ne.s32.totalorder %s27, %s30
      %p39 = scmp.eq.s32.totalorder %s22, 3
      %p40 = por %p38, %p39
      %p41 = scmp.ne.s32.totalorder %s30, %s31
      %p42 = scmp.eq.s32.totalorder %s22, 0
      %p43 = por %p41, %p42
      %p44 = scmp.ne.s32.totalorder %s30, %s31
      %p45 = scmp.eq.s32.totalorder %s23, 3
      %p46 = por %p44, %p45
      %p48 = scmp.ne.s32.totalorder %s31, %s47
      %p49 = scmp.eq.s32.totalorder %s23, 0
      %p50 = por %p48, %p49
      %s51 = ssub.s32 %s17, %s24
      %p52 = scmp.eq.s32.totalorder %s51, 0
      %s54 = sadd.s32 %s53, 1
      %s55 = scalar_select %p52, %s53, %s54
      %p58 = pneg %p52
      %p59 = scmp.eq.s32.totalorder %s17, 3
      %p60 = por %p58, %p59
      %p61 = scmp.ne.s32.totalorder %s53, %s56
      %p62 = scmp.eq.s32.totalorder %s17, 0
      %p63 = por %p61, %p62
      %p64 = scmp.ne.s32.totalorder %s53, %s56
      %p65 = scmp.eq.s32.totalorder %s22, 3
      %p66 = por %p64, %p65
      %p67 = scmp.ne.s32.totalorder %s56, %s57
      %p68 = scmp.eq.s32.totalorder %s22, 0
      %p69 = por %p67, %p68
      %p70 = scmp.ne.s32.totalorder %s56, %s57
      %p71 = scmp.eq.s32.totalorder %s23, 3
      %p72 = por %p70, %p71
      %p74 = scmp.ne.s32.totalorder %s57, %s73
      %p75 = scmp.eq.s32.totalorder %s23, 0
      %p76 = por %p74, %p75
      %s78 = sadd.s32 %s77, 1
      %p81 = scmp.eq.s32.totalorder %s17, 3
      %p82 = scmp.ne.s32.totalorder %s77, %s79
      %p83 = scmp.eq.s32.totalorder %s17, 0
      %p84 = por %p82, %p83
      %p85 = scmp.ne.s32.totalorder %s77, %s79
      %p86 = scmp.eq.s32.totalorder %s22, 3
      %p87 = por %p85, %p86
      %p88 = scmp.ne.s32.totalorder %s79, %s80
      %p89 = scmp.eq.s32.totalorder %s22, 0
      %p90 = por %p88, %p89
      %p91 = scmp.ne.s32.totalorder %s79, %s80
      %p92 = scmp.eq.s32.totalorder %s23, 3
      %p93 = por %p91, %p92
      %p95 = scmp.ne.s32.totalorder %s80, %s94
      %p96 = scmp.eq.s32.totalorder %s23, 0
      %p97 = por %p95, %p96
      %s99 = sadd.s32 %s98, 1
      %p102 = scmp.eq.s32.totalorder %s17, 3
      %p103 = scmp.ne.s32.totalorder %s98, %s100
      %p104 = scmp.eq.s32.totalorder %s17, 0
      %p105 = por %p103, %p104
      %p106 = scmp.ne.s32.totalorder %s98, %s100
      %p107 = scmp.eq.s32.totalorder %s22, 3
      %p108 = por %p106, %p107
      %p109 = scmp.ne.s32.totalorder %s100, %s101
      %p110 = scmp.eq.s32.totalorder %s22, 0
      %p111 = por %p109, %p110
      %p112 = scmp.ne.s32.totalorder %s100, %s101
      %p113 = scmp.eq.s32.totalorder %s23, 3
      %p114 = por %p112, %p113
      %p116 = scmp.ne.s32.totalorder %s101, %s115
      %p117 = scmp.eq.s32.totalorder %s23, 0
      %p118 = por %p116, %p117
      %s120 = sadd.s32 %s119, 1
      %p123 = scmp.eq.s32.totalorder %s17, 3
      %p124 = scmp.ne.s32.totalorder %s119, %s121
      %p125 = scmp.eq.s32.totalorder %s17, 0
      %p126 = por %p124, %p125
      %p127 = scmp.ne.s32.totalorder %s119, %s121
      %p128 = scmp.eq.s32.totalorder %s22, 3
      %p129 = por %p127, %p128
      %p130 = scmp.ne.s32.totalorder %s121, %s122
      %p131 = scmp.eq.s32.totalorder %s22, 0
      %p132 = por %p130, %p131
      %p133 = scmp.ne.s32.totalorder %s121, %s122
      %p134 = scmp.eq.s32.totalorder %s23, 3
      %p135 = por %p133, %p134
      %p137 = scmp.ne.s32.totalorder %s122, %s136
      %p138 = scmp.eq.s32.totalorder %s23, 0
      %p139 = por %p137, %p138
      %s141 = sadd.s32 %s140, 1
      %p144 = scmp.eq.s32.totalorder %s17, 3
      %p145 = scmp.ne.s32.totalorder %s140, %s142
      %p146 = scmp.eq.s32.totalorder %s17, 0
      %p147 = por %p145, %p146
      %p148 = scmp.ne.s32.totalorder %s140, %s142
      %p149 = scmp.eq.s32.totalorder %s22, 3
      %p150 = por %p148, %p149
      %p151 = scmp.ne.s32.totalorder %s142, %s143
      %p152 = scmp.eq.s32.totalorder %s22, 0
      %p153 = por %p151, %p152
      %p154 = scmp.ne.s32.totalorder %s142, %s143
      %p155 = scmp.eq.s32.totalorder %s23, 3
      %p156 = por %p154, %p155
      %p158 = scmp.ne.s32.totalorder %s143, %s157
      %p159 = scmp.eq.s32.totalorder %s23, 0
      %p160 = por %p158, %p159
      %s161 = ssub.s32 %s17, %s24
      %p162 = scmp.eq.s32.totalorder %s161, 0
      %s164 = sadd.s32 %s163, 1
      %s165 = scalar_select %p162, %s163, %s164
      %p168 = pneg %p162
      %p169 = scmp.eq.s32.totalorder %s17, 3
      %p170 = por %p168, %p169
      %p171 = scmp.ne.s32.totalorder %s163, %s166
      %p172 = scmp.eq.s32.totalorder %s17, 0
      %p173 = por %p171, %p172
      %p174 = scmp.ne.s32.totalorder %s163, %s166
      %p175 = scmp.eq.s32.totalorder %s22, 3
      %p176 = por %p174, %p175
      %p177 = scmp.ne.s32.totalorder %s166, %s167
      %p178 = scmp.eq.s32.totalorder %s22, 0
      %p179 = por %p177, %p178
      %p180 = scmp.ne.s32.totalorder %s166, %s167
      %p181 = scmp.eq.s32.totalorder %s23, 3
      %p182 = por %p180, %p181
      %p184 = scmp.ne.s32.totalorder %s167, %s183
      %p185 = scmp.eq.s32.totalorder %s23, 0
      %p186 = por %p184, %p185
      %p187 = scmp.le.s32.totalorder 1, %s17
      %p188 = scmp.lt.s32.totalorder %s17, 5
      %p189 = pnand %p187, %p188
      %p190 = pneg %p189
      // Predicated region
      $region9: #{tpu_custom_call.1} parent=5 // pred_check
        _
      $region10: #{tpu_custom_call.1} parent=5 // pred_check_branch
        %192 = sbr.rel (%p189) target = $region12
      $region11: #{tpu_custom_call.1} parent=5 // pred_region
        %s193 = ssub.s32 %s17, 1
        // Predicated region
        $region13: #{tpu_custom_call.1} parent=11 // pred_check
          %p194 = pneg %p90
        $region14: #{tpu_custom_call.1} parent=11 // pred_check_branch
          %196 = sbr.rel (%p194) target = $region16
        $region15: #{tpu_custom_call.1} parent=11 // pred_region
          _
        $region16: #{tpu_custom_call.1} parent=11 // pred_fallthru
          _
        // Predicated region
        $region17: #{tpu_custom_call.1} parent=11 // pred_check
          %p197 = pneg %p111
        $region18: #{tpu_custom_call.1} parent=11 // pred_check_branch
          %199 = sbr.rel (%p197) target = $region20
        $region19: #{tpu_custom_call.1} parent=11 // pred_region
          _
        $region20: #{tpu_custom_call.1} parent=11 // pred_fallthru
          _
        // Predicated region
        $region21: #{tpu_custom_call.1} parent=11 // pred_check
          %p200 = pneg %p132
        $region22: #{tpu_custom_call.1} parent=11 // pred_check_branch
          %202 = sbr.rel (%p200) target = $region24
        $region23: #{tpu_custom_call.1} parent=11 // pred_region
          _
        $region24: #{tpu_custom_call.1} parent=11 // pred_fallthru
          _
        // Predicated region
        $region25: #{tpu_custom_call.1} parent=11 // pred_check
          %p203 = pneg %p153
        $region26: #{tpu_custom_call.1} parent=11 // pred_check_branch
          %205 = sbr.rel (%p203) target = $region28
        $region27: #{tpu_custom_call.1} parent=11 // pred_region
          _
        $region28: #{tpu_custom_call.1} parent=11 // pred_fallthru
          _
      $region12: #{tpu_custom_call.1} parent=5 // pred_fallthru
        _
      %p206 = scmp.lt.s32.totalorder %s17, 4
      // Predicated region
      $region29: #{tpu_custom_call.1} parent=5 // pred_check
        %p207 = pneg %p206
      $region30: #{tpu_custom_call.1} parent=5 // pred_check_branch
        %209 = sbr.rel (%p207) target = $region32
      $region31: #{tpu_custom_call.1} parent=5 // pred_region
        // Predicated region
        $region33: #{tpu_custom_call.1} parent=31 // pred_check
          %p210 = pneg %p37
        $region34: #{tpu_custom_call.1} parent=31 // pred_check_branch
          %212 = sbr.rel (%p210) target = $region36
        $region35: #{tpu_custom_call.1} parent=31 // pred_region
          %s213 = smul.u32 64, %s17
          %p214 = scmp.lt.s32.totalorder %s213, 255
          %s215 = scalar_select %p214, %s213, 255
          %s216 = smul.addr %s215, 8
          %s217 = scalar_lea.vmem %s0, %s216
          %s218 = smul.u32 64, %s17
        $region36: #{tpu_custom_call.1} parent=31 // pred_fallthru
          _
        // Predicated region
        $region37: #{tpu_custom_call.1} parent=31 // pred_check
          %p219 = pneg %p63
        $region38: #{tpu_custom_call.1} parent=31 // pred_check_branch
          %221 = sbr.rel (%p219) target = $region40
        $region39: #{tpu_custom_call.1} parent=31 // pred_region
          %s222 = smul.u32 64, %s17
          %p223 = scmp.lt.s32.totalorder %s222, 255
          %s224 = scalar_select %p223, %s222, 255
          %s225 = smul.addr %s224, 8
          %s226 = scalar_lea.vmem %s1, %s225
          %s227 = smul.u32 64, %s17
        $region40: #{tpu_custom_call.1} parent=31 // pred_fallthru
          _
      $region32: #{tpu_custom_call.1} parent=5 // pred_fallthru
        _
      %p228 = scmp.le.s32.totalorder 1, %s17
      %p229 = scmp.lt.s32.totalorder %s17, 5
      %p230 = pnand %p228, %p229
      %p231 = pneg %p230
      // Predicated region
      $region41: #{tpu_custom_call.1} parent=5 // pred_check
        _
      $region42: #{tpu_custom_call.1} parent=5 // pred_check_branch
        %233 = sbr.rel (%p230) target = $region44
      $region43: #{tpu_custom_call.1} parent=5 // pred_region
        %s234 = ssub.s32 %s17, 1
        %s235 = smul.u32 64, %s22
        %p236 = scmp.lt.s32.totalorder %s235, 255
        %s237 = scalar_select %p236, %s235, 255
        %s238 = smul.addr %s237, 8
        %s239 = scalar_lea.vmem %s0, %s238
        %p240 = pneg %p43
        %p241 = pneg %p40
        %s242 = smul.u32 64, %s22
        %p243 = scmp.lt.s32.totalorder %s242, 255
        %s244 = scalar_select %p243, %s242, 255
        %s245 = smul.addr %s244, 8
        %s246 = scalar_lea.vmem %s1, %s245
        %p247 = pneg %p69
        %p248 = pneg %p66
        %p249 = pneg %p90
        %p250 = pneg %p87
        %p251 = pneg %p111
        %p252 = pneg %p108
        %p253 = pneg %p132
        %p254 = pneg %p129
        %p255 = pneg %p153
        %p256 = pneg %p150
        %p257 = pneg %p179
        %p258 = pneg %p176
        %s259 = sand.u32 %s166, 1
        %s260 = scalar_lea.sflag [#allocation4], %s259
        %s261 = sand.u32 %s166, 1
        %s262 = smul.addr %s261, 4
        %s263 = scalar_lea.vmem [#allocation3], %s262
        %s264 = smul.u32 64, %s22
        %p265 = scmp.lt.s32.totalorder %s264, 255
        %s266 = scalar_select %p265, %s264, 255
        %s267 = smul.addr %s266, 8
        %s268 = scalar_lea.vmem %s0, %s267
        %s269 = smul.u32 64, %s22
        %s270 = smul.u32 64, %s22
        %p271 = scmp.lt.s32.totalorder %s270, 255
        %s272 = scalar_select %p271, %s270, 255
        %s273 = smul.addr %s272, 8
        %s274 = scalar_lea.vmem %s1, %s273
        %s275 = smul.u32 64, %s22
        %s276 = smul.u32 4, %s22
        %v277 = vld [vmem:[%s268] sm:$0xff]
        %v278 = vld [vmem:[%s268 + $0x8] sm:$0xff]
        %v279 = vld [vmem:[%s268 + $0x10] sm:$0xff]
        %v280 = vld [vmem:[%s268 + $0x18] sm:$0xff]
        %v281 = vld [vmem:[%s268 + $0x20] sm:$0xff]
        %v282 = vld [vmem:[%s268 + $0x28] sm:$0xff]
        %v283 = vld [vmem:[%s268 + $0x30] sm:$0xff]
        %v284 = vld [vmem:[%s268 + $0x38] sm:$0xff]
        %v285 = vld [vmem:[%s268 + $0x40] sm:$0xff]
        %v286 = vld [vmem:[%s268 + $0x48] sm:$0xff]
        %v287 = vld [vmem:[%s268 + $0x50] sm:$0xff]
        %v288 = vld [vmem:[%s268 + $0x58] sm:$0xff]
        %v289 = vld [vmem:[%s268 + $0x60] sm:$0xff]
        %v290 = vld [vmem:[%s268 + $0x68] sm:$0xff]
        %v291 = vld [vmem:[%s268 + $0x70] sm:$0xff]
        %v292 = vld [vmem:[%s268 + $0x78] sm:$0xff]
        %v293 = vld [vmem:[%s268 + $0x80] sm:$0xff]
        %v294 = vld [vmem:[%s268 + $0x88] sm:$0xff]
        %v295 = vld [vmem:[%s268 + $0x90] sm:$0xff]
        %v296 = vld [vmem:[%s268 + $0x98] sm:$0xff]
        %v297 = vld [vmem:[%s268 + $0xa0] sm:$0xff]
        %v298 = vld [vmem:[%s268 + $0xa8] sm:$0xff]
        %v299 = vld [vmem:[%s268 + $0xb0] sm:$0xff]
        %v300 = vld [vmem:[%s268 + $0xb8] sm:$0xff]
        %v301 = vld [vmem:[%s268 + $0xc0] sm:$0xff]
        %v302 = vld [vmem:[%s268 + $0xc8] sm:$0xff]
        %v303 = vld [vmem:[%s268 + $0xd0] sm:$0xff]
        %v304 = vld [vmem:[%s268 + $0xd8] sm:$0xff]
        %v305 = vld [vmem:[%s268 + $0xe0] sm:$0xff]
        %v306 = vld [vmem:[%s268 + $0xe8] sm:$0xff]
        %v307 = vld [vmem:[%s268 + $0xf0] sm:$0xff]
        %v308 = vld [vmem:[%s268 + $0xf8] sm:$0xff]
        %v309 = vld [vmem:[%s268 + $0x100] sm:$0xff]
        %v310 = vld [vmem:[%s268 + $0x108] sm:$0xff]
        %v311 = vld [vmem:[%s268 + $0x110] sm:$0xff]
        %v312 = vld [vmem:[%s268 + $0x118] sm:$0xff]
        %v313 = vld [vmem:[%s268 + $0x120] sm:$0xff]
        %v314 = vld [vmem:[%s268 + $0x128] sm:$0xff]
        %v315 = vld [vmem:[%s268 + $0x130] sm:$0xff]
        %v316 = vld [vmem:[%s268 + $0x138] sm:$0xff]
        %v317 = vld [vmem:[%s268 + $0x140] sm:$0xff]
        %v318 = vld [vmem:[%s268 + $0x148] sm:$0xff]
        %v319 = vld [vmem:[%s268 + $0x150] sm:$0xff]
        %v320 = vld [vmem:[%s268 + $0x158] sm:$0xff]
        %v321 = vld [vmem:[%s268 + $0x160] sm:$0xff]
        %v322 = vld [vmem:[%s268 + $0x168] sm:$0xff]
        %v323 = vld [vmem:[%s268 + $0x170] sm:$0xff]
        %v324 = vld [vmem:[%s268 + $0x178] sm:$0xff]
        %v325 = vld [vmem:[%s268 + $0x180] sm:$0xff]
        %v326 = vld [vmem:[%s268 + $0x188] sm:$0xff]
        %v327 = vld [vmem:[%s268 + $0x190] sm:$0xff]
        %v328 = vld [vmem:[%s268 + $0x198] sm:$0xff]
        %v329 = vld [vmem:[%s268 + $0x1a0] sm:$0xff]
        %v330 = vld [vmem:[%s268 + $0x1a8] sm:$0xff]
        %v331 = vld [vmem:[%s268 + $0x1b0] sm:$0xff]
        %v332 = vld [vmem:[%s268 + $0x1b8] sm:$0xff]
        %v333 = vld [vmem:[%s268 + $0x1c0] sm:$0xff]
        %v334 = vld [vmem:[%s268 + $0x1c8] sm:$0xff]
        %v335 = vld [vmem:[%s268 + $0x1d0] sm:$0xff]
        %v336 = vld [vmem:[%s268 + $0x1d8] sm:$0xff]
        %v337 = vld [vmem:[%s268 + $0x1e0] sm:$0xff]
        %v338 = vld [vmem:[%s268 + $0x1e8] sm:$0xff]
        %v339 = vld [vmem:[%s268 + $0x1f0] sm:$0xff]
        %v340 = vld [vmem:[%s268 + $0x1f8] sm:$0xff]
        %v341 = vld [vmem:[%s274] sm:$0xff]
        %v342 = vld [vmem:[%s274 + $0x8] sm:$0xff]
        %v343 = vld [vmem:[%s274 + $0x10] sm:$0xff]
        %v344 = vld [vmem:[%s274 + $0x18] sm:$0xff]
        %v345 = vld [vmem:[%s274 + $0x20] sm:$0xff]
        %v346 = vld [vmem:[%s274 + $0x28] sm:$0xff]
        %v347 = vld [vmem:[%s274 + $0x30] sm:$0xff]
        %v348 = vld [vmem:[%s274 + $0x38] sm:$0xff]
        %v349 = vld [vmem:[%s274 + $0x40] sm:$0xff]
        %v350 = vld [vmem:[%s274 + $0x48] sm:$0xff]
        %v351 = vld [vmem:[%s274 + $0x50] sm:$0xff]
        %v352 = vld [vmem:[%s274 + $0x58] sm:$0xff]
        %v353 = vld [vmem:[%s274 + $0x60] sm:$0xff]
        %v354 = vld [vmem:[%s274 + $0x68] sm:$0xff]
        %v355 = vld [vmem:[%s274 + $0x70] sm:$0xff]
        %v356 = vld [vmem:[%s274 + $0x78] sm:$0xff]
        %v357 = vld [vmem:[%s274 + $0x80] sm:$0xff]
        %v358 = vld [vmem:[%s274 + $0x88] sm:$0xff]
        %v359 = vld [vmem:[%s274 + $0x90] sm:$0xff]
        %v360 = vld [vmem:[%s274 + $0x98] sm:$0xff]
        %v361 = vld [vmem:[%s274 + $0xa0] sm:$0xff]
        %v362 = vld [vmem:[%s274 + $0xa8] sm:$0xff]
        %v363 = vld [vmem:[%s274 + $0xb0] sm:$0xff]
        %v364 = vld [vmem:[%s274 + $0xb8] sm:$0xff]
        %v365 = vld [vmem:[%s274 + $0xc0] sm:$0xff]
        %v366 = vld [vmem:[%s274 + $0xc8] sm:$0xff]
        %v367 = vld [vmem:[%s274 + $0xd0] sm:$0xff]
        %v368 = vld [vmem:[%s274 + $0xd8] sm:$0xff]
        %v369 = vld [vmem:[%s274 + $0xe0] sm:$0xff]
        %v370 = vld [vmem:[%s274 + $0xe8] sm:$0xff]
        %v371 = vld [vmem:[%s274 + $0xf0] sm:$0xff]
        %v372 = vld [vmem:[%s274 + $0xf8] sm:$0xff]
        %v373 = vld [vmem:[%s274 + $0x100] sm:$0xff]
        %v374 = vld [vmem:[%s274 + $0x108] sm:$0xff]
        %v375 = vld [vmem:[%s274 + $0x110] sm:$0xff]
        %v376 = vld [vmem:[%s274 + $0x118] sm:$0xff]
        %v377 = vld [vmem:[%s274 + $0x120] sm:$0xff]
        %v378 = vld [vmem:[%s274 + $0x128] sm:$0xff]
        %v379 = vld [vmem:[%s274 + $0x130] sm:$0xff]
        %v380 = vld [vmem:[%s274 + $0x138] sm:$0xff]
        %v381 = vld [vmem:[%s274 + $0x140] sm:$0xff]
        %v382 = vld [vmem:[%s274 + $0x148] sm:$0xff]
        %v383 = vld [vmem:[%s274 + $0x150] sm:$0xff]
        %v384 = vld [vmem:[%s274 + $0x158] sm:$0xff]
        %v385 = vld [vmem:[%s274 + $0x160] sm:$0xff]
        %v386 = vld [vmem:[%s274 + $0x168] sm:$0xff]
        %v387 = vld [vmem:[%s274 + $0x170] sm:$0xff]
        %v388 = vld [vmem:[%s274 + $0x178] sm:$0xff]
        %v389 = vld [vmem:[%s274 + $0x180] sm:$0xff]
        %v390 = vld [vmem:[%s274 + $0x188] sm:$0xff]
        %v391 = vld [vmem:[%s274 + $0x190] sm:$0xff]
        %v392 = vld [vmem:[%s274 + $0x198] sm:$0xff]
        %v393 = vld [vmem:[%s274 + $0x1a0] sm:$0xff]
        %v394 = vld [vmem:[%s274 + $0x1a8] sm:$0xff]
        %v395 = vld [vmem:[%s274 + $0x1b0] sm:$0xff]
        %v396 = vld [vmem:[%s274 + $0x1b8] sm:$0xff]
        %v397 = vld [vmem:[%s274 + $0x1c0] sm:$0xff]
        %v398 = vld [vmem:[%s274 + $0x1c8] sm:$0xff]
        %v399 = vld [vmem:[%s274 + $0x1d0] sm:$0xff]
        %v400 = vld [vmem:[%s274 + $0x1d8] sm:$0xff]
        %v401 = vld [vmem:[%s274 + $0x1e0] sm:$0xff]
        %v402 = vld [vmem:[%s274 + $0x1e8] sm:$0xff]
        %v403 = vld [vmem:[%s274 + $0x1f0] sm:$0xff]
        %v404 = vld [vmem:[%s274 + $0x1f8] sm:$0xff]
        %v405 = vmul.f32 %v277, %v341
        %v406 = vmul.f32 %v278, %v342
        %v407 = vmul.f32 %v279, %v343
        %v408 = vmul.f32 %v280, %v344
        %v409 = vmul.f32 %v281, %v345
        %v410 = vmul.f32 %v282, %v346
        %v411 = vmul.f32 %v283, %v347
        %v412 = vmul.f32 %v284, %v348
        %v413 = vmul.f32 %v285, %v349
        %v414 = vmul.f32 %v286, %v350
        %v415 = vmul.f32 %v287, %v351
        %v416 = vmul.f32 %v288, %v352
        %v417 = vmul.f32 %v289, %v353
        %v418 = vmul.f32 %v290, %v354
        %v419 = vmul.f32 %v291, %v355
        %v420 = vmul.f32 %v292, %v356
        %v421 = vmul.f32 %v293, %v357
        %v422 = vmul.f32 %v294, %v358
        %v423 = vmul.f32 %v295, %v359
        %v424 = vmul.f32 %v296, %v360
        %v425 = vmul.f32 %v297, %v361
        %v426 = vmul.f32 %v298, %v362
        %v427 = vmul.f32 %v299, %v363
        %v428 = vmul.f32 %v300, %v364
        %v429 = vmul.f32 %v301, %v365
        %v430 = vmul.f32 %v302, %v366
        %v431 = vmul.f32 %v303, %v367
        %v432 = vmul.f32 %v304, %v368
        %v433 = vmul.f32 %v305, %v369
        %v434 = vmul.f32 %v306, %v370
        %v435 = vmul.f32 %v307, %v371
        %v436 = vmul.f32 %v308, %v372
        %v437 = vmul.f32 %v309, %v373
        %v438 = vmul.f32 %v310, %v374
        %v439 = vmul.f32 %v311, %v375
        %v440 = vmul.f32 %v312, %v376
        %v441 = vmul.f32 %v313, %v377
        %v442 = vmul.f32 %v314, %v378
        %v443 = vmul.f32 %v315, %v379
        %v444 = vmul.f32 %v316, %v380
        %v445 = vmul.f32 %v317, %v381
        %v446 = vmul.f32 %v318, %v382
        %v447 = vmul.f32 %v319, %v383
        %v448 = vmul.f32 %v320, %v384
        %v449 = vmul.f32 %v321, %v385
        %v450 = vmul.f32 %v322, %v386
        %v451 = vmul.f32 %v323, %v387
        %v452 = vmul.f32 %v324, %v388
        %v453 = vmul.f32 %v325, %v389
        %v454 = vmul.f32 %v326, %v390
        %v455 = vmul.f32 %v327, %v391
        %v456 = vmul.f32 %v328, %v392
        %v457 = vmul.f32 %v329, %v393
        %v458 = vmul.f32 %v330, %v394
        %v459 = vmul.f32 %v331, %v395
        %v460 = vmul.f32 %v332, %v396
        %v461 = vmul.f32 %v333, %v397
        %v462 = vmul.f32 %v334, %v398
        %v463 = vmul.f32 %v335, %v399
        %v464 = vmul.f32 %v336, %v400
        %v465 = vmul.f32 %v337, %v401
        %v466 = vmul.f32 %v338, %v402
        %v467 = vmul.f32 %v339, %v403
        %v468 = vmul.f32 %v340, %v404
        %v469 = vld [vmem:[%s2] sm:$0xff]
        %v470 = vld [vmem:[%s2 + $0x8] sm:$0xff]
        %v471 = vld [vmem:[%s2 + $0x10] sm:$0xff]
        %v472 = vld [vmem:[%s2 + $0x18] sm:$0xff]
        %v473 = vld [vmem:[%s3] sm:$0x1]
        %v475 = vperm.slane %v473, 0
        %vm477 = vcmask 261120
        %v479 = vsel %vm477, %v405, 0
        %v482 = vsel %vm477, %v406, 0
        %v485 = vsel %vm477, %v407, 0
        %v488 = vsel %vm477, %v408, 0
        %v491 = vsel %vm477, %v409, 0
        %v494 = vsel %vm477, %v410, 0
        %v497 = vsel %vm477, %v411, 0
        %v500 = vsel %vm477, %v412, 0
        %v503 = vsel %vm477, %v413, 0
        %v506 = vsel %vm477, %v414, 0
        %v509 = vsel %vm477, %v415, 0
        %v512 = vsel %vm477, %v416, 0
        %v515 = vsel %vm477, %v417, 0
        %v518 = vsel %vm477, %v418, 0
        %v521 = vsel %vm477, %v419, 0
        %v524 = vsel %vm477, %v420, 0
        %v527 = vsel %vm477, %v421, 0
        %v530 = vsel %vm477, %v422, 0
        %v533 = vsel %vm477, %v423, 0
        %v536 = vsel %vm477, %v424, 0
        %v539 = vsel %vm477, %v425, 0
        %v542 = vsel %vm477, %v426, 0
        %v545 = vsel %vm477, %v427, 0
        %v548 = vsel %vm477, %v428, 0
        %v551 = vsel %vm477, %v429, 0
        %v554 = vsel %vm477, %v430, 0
        %v557 = vsel %vm477, %v431, 0
        %v560 = vsel %vm477, %v432, 0
        %v563 = vsel %vm477, %v433, 0
        %v566 = vsel %vm477, %v434, 0
        %v569 = vsel %vm477, %v435, 0
        %v572 = vsel %vm477, %v436, 0
        %v575 = vsel %vm477, %v437, 0
        %v578 = vsel %vm477, %v438, 0
        %v581 = vsel %vm477, %v439, 0
        %v584 = vsel %vm477, %v440, 0
        %v587 = vsel %vm477, %v441, 0
        %v590 = vsel %vm477, %v442, 0
        %v593 = vsel %vm477, %v443, 0
        %v596 = vsel %vm477, %v444, 0
        %v599 = vsel %vm477, %v445, 0
        %v602 = vsel %vm477, %v446, 0
        %v605 = vsel %vm477, %v447, 0
        %v608 = vsel %vm477, %v448, 0
        %v611 = vsel %vm477, %v449, 0
        %v614 = vsel %vm477, %v450, 0
        %v617 = vsel %vm477, %v451, 0
        %v620 = vsel %vm477, %v452, 0
        %v623 = vsel %vm477, %v453, 0
        %v626 = vsel %vm477, %v454, 0
        %v629 = vsel %vm477, %v455, 0
        %v632 = vsel %vm477, %v456, 0
        %v635 = vsel %vm477, %v457, 0
        %v638 = vsel %vm477, %v458, 0
        %v641 = vsel %vm477, %v459, 0
        %v644 = vsel %vm477, %v460, 0
        %v647 = vsel %vm477, %v461, 0
        %v650 = vsel %vm477, %v462, 0
        %v653 = vsel %vm477, %v463, 0
        %v656 = vsel %vm477, %v464, 0
        %v659 = vsel %vm477, %v465, 0
        %v662 = vsel %vm477, %v466, 0
        %v665 = vsel %vm477, %v467, 0
        %v668 = vsel %vm477, %v468, 0
        %670 = vmatpush.msra.mxu0 0.0
        %671 = vmatpush.msra.mxu0 0.0
        %672 = vmatpush.msra.mxu0 0.0
        %673 = vmatpush.msra.mxu0 0.0
        %674 = vmatpush.msra.mxu0 0.0
        %675 = vmatpush.msra.mxu0 0.0
        %676 = vmatpush.msra.mxu0 0.0
        %677 = vmatpush.msra.mxu0 0.0
        %678 = vmatpush.msra.mxu0 0.0
        %679 = vmatpush.msra.mxu0 0.0
        %680 = vmatpush.msra.mxu0 0.0
        %681 = vmatpush.msra.mxu0 0.0
        %682 = vmatpush.msra.mxu0 %v472
        %683 = vmatpush.msra.mxu0 %v471
        %684 = vmatpush.msra.mxu0 %v470
        %685 = vmatpush.msra.mxu0 %v469
        %686 = vmatmul.f32.gmra.mxu0 %v479
        %v687 = vpop.f32.mrf.mxu0
        %v688 = vadd.f32 %v475, %v687
        %689 = vmatmul.f32.gmra.mxu0 %v482
        %v690 = vpop.f32.mrf.mxu0
        %v691 = vadd.f32 %v475, %v690
        %692 = vmatmul.f32.gmra.mxu0 %v485
        %v693 = vpop.f32.mrf.mxu0
        %v694 = vadd.f32 %v475, %v693
        %695 = vmatmul.f32.gmra.mxu0 %v488
        %v696 = vpop.f32.mrf.mxu0
        %v697 = vadd.f32 %v475, %v696
        %698 = vmatmul.f32.gmra.mxu0 %v491
        %v699 = vpop.f32.mrf.mxu0
        %v700 = vadd.f32 %v475, %v699
        %701 = vmatmul.f32.gmra.mxu0 %v494
        %v702 = vpop.f32.mrf.mxu0
        %v703 = vadd.f32 %v475, %v702
        %704 = vmatmul.f32.gmra.mxu0 %v497
        %v705 = vpop.f32.mrf.mxu0
        %v706 = vadd.f32 %v475, %v705
        %707 = vmatmul.f32.gmra.mxu0 %v500
        %v708 = vpop.f32.mrf.mxu0
        %v709 = vadd.f32 %v475, %v708
        %710 = vmatmul.f32.gmra.mxu0 %v503
        %v711 = vpop.f32.mrf.mxu0
        %v712 = vadd.f32 %v475, %v711
        %713 = vmatmul.f32.gmra.mxu0 %v506
        %v714 = vpop.f32.mrf.mxu0
        %v715 = vadd.f32 %v475, %v714
        %716 = vmatmul.f32.gmra.mxu0 %v509
        %v717 = vpop.f32.mrf.mxu0
        %v718 = vadd.f32 %v475, %v717
        %719 = vmatmul.f32.gmra.mxu0 %v512
        %v720 = vpop.f32.mrf.mxu0
        %v721 = vadd.f32 %v475, %v720
        %722 = vmatmul.f32.gmra.mxu0 %v515
        %v723 = vpop.f32.mrf.mxu0
        %v724 = vadd.f32 %v475, %v723
        %725 = vmatmul.f32.gmra.mxu0 %v518
        %v726 = vpop.f32.mrf.mxu0
        %v727 = vadd.f32 %v475, %v726
        %728 = vmatmul.f32.gmra.mxu0 %v521
        %v729 = vpop.f32.mrf.mxu0
        %v730 = vadd.f32 %v475, %v729
        %731 = vmatmul.f32.gmra.mxu0 %v524
        %v732 = vpop.f32.mrf.mxu0
        %v733 = vadd.f32 %v475, %v732
        %734 = vmatmul.f32.gmra.mxu0 %v527
        %v735 = vpop.f32.mrf.mxu0
        %v736 = vadd.f32 %v475, %v735
        %737 = vmatmul.f32.gmra.mxu0 %v530
        %v738 = vpop.f32.mrf.mxu0
        %v739 = vadd.f32 %v475, %v738
        %740 = vmatmul.f32.gmra.mxu0 %v533
        %v741 = vpop.f32.mrf.mxu0
        %v742 = vadd.f32 %v475, %v741
        %743 = vmatmul.f32.gmra.mxu0 %v536
        %v744 = vpop.f32.mrf.mxu0
        %v745 = vadd.f32 %v475, %v744
        %746 = vmatmul.f32.gmra.mxu0 %v539
        %v747 = vpop.f32.mrf.mxu0
        %v748 = vadd.f32 %v475, %v747
        %749 = vmatmul.f32.gmra.mxu0 %v542
        %v750 = vpop.f32.mrf.mxu0
        %v751 = vadd.f32 %v475, %v750
        %752 = vmatmul.f32.gmra.mxu0 %v545
        %v753 = vpop.f32.mrf.mxu0
        %v754 = vadd.f32 %v475, %v753
        %755 = vmatmul.f32.gmra.mxu0 %v548
        %v756 = vpop.f32.mrf.mxu0
        %v757 = vadd.f32 %v475, %v756
        %758 = vmatmul.f32.gmra.mxu0 %v551
        %v759 = vpop.f32.mrf.mxu0
        %v760 = vadd.f32 %v475, %v759
        %761 = vmatmul.f32.gmra.mxu0 %v554
        %v762 = vpop.f32.mrf.mxu0
        %v763 = vadd.f32 %v475, %v762
        %764 = vmatmul.f32.gmra.mxu0 %v557
        %v765 = vpop.f32.mrf.mxu0
        %v766 = vadd.f32 %v475, %v765
        %767 = vmatmul.f32.gmra.mxu0 %v560
        %v768 = vpop.f32.mrf.mxu0
        %v769 = vadd.f32 %v475, %v768
        %770 = vmatmul.f32.gmra.mxu0 %v563
        %v771 = vpop.f32.mrf.mxu0
        %v772 = vadd.f32 %v475, %v771
        %773 = vmatmul.f32.gmra.mxu0 %v566
        %v774 = vpop.f32.mrf.mxu0
        %v775 = vadd.f32 %v475, %v774
        %776 = vmatmul.f32.gmra.mxu0 %v569
        %v777 = vpop.f32.mrf.mxu0
        %v778 = vadd.f32 %v475, %v777
        %779 = vmatmul.f32.gmra.mxu0 %v572
        %v780 = vpop.f32.mrf.mxu0
        %v781 = vadd.f32 %v475, %v780
        %782 = vmatmul.f32.gmra.mxu0 %v575
        %v783 = vpop.f32.mrf.mxu0
        %v784 = vadd.f32 %v475, %v783
        %785 = vmatmul.f32.gmra.mxu0 %v578
        %v786 = vpop.f32.mrf.mxu0
        %v787 = vadd.f32 %v475, %v786
        %788 = vmatmul.f32.gmra.mxu0 %v581
        %v789 = vpop.f32.mrf.mxu0
        %v790 = vadd.f32 %v475, %v789
        %791 = vmatmul.f32.gmra.mxu0 %v584
        %v792 = vpop.f32.mrf.mxu0
        %v793 = vadd.f32 %v475, %v792
        %794 = vmatmul.f32.gmra.mxu0 %v587
        %v795 = vpop.f32.mrf.mxu0
        %v796 = vadd.f32 %v475, %v795
        %797 = vmatmul.f32.gmra.mxu0 %v590
        %v798 = vpop.f32.mrf.mxu0
        %v799 = vadd.f32 %v475, %v798
        %800 = vmatmul.f32.gmra.mxu0 %v593
        %v801 = vpop.f32.mrf.mxu0
        %v802 = vadd.f32 %v475, %v801
        %803 = vmatmul.f32.gmra.mxu0 %v596
        %v804 = vpop.f32.mrf.mxu0
        %v805 = vadd.f32 %v475, %v804
        %806 = vmatmul.f32.gmra.mxu0 %v599
        %v807 = vpop.f32.mrf.mxu0
        %v808 = vadd.f32 %v475, %v807
        %809 = vmatmul.f32.gmra.mxu0 %v602
        %v810 = vpop.f32.mrf.mxu0
        %v811 = vadd.f32 %v475, %v810
        %812 = vmatmul.f32.gmra.mxu0 %v605
        %v813 = vpop.f32.mrf.mxu0
        %v814 = vadd.f32 %v475, %v813
        %815 = vmatmul.f32.gmra.mxu0 %v608
        %v816 = vpop.f32.mrf.mxu0
        %v817 = vadd.f32 %v475, %v816
        %818 = vmatmul.f32.gmra.mxu0 %v611
        %v819 = vpop.f32.mrf.mxu0
        %v820 = vadd.f32 %v475, %v819
        %821 = vmatmul.f32.gmra.mxu0 %v614
        %v822 = vpop.f32.mrf.mxu0
        %v823 = vadd.f32 %v475, %v822
        %824 = vmatmul.f32.gmra.mxu0 %v617
        %v825 = vpop.f32.mrf.mxu0
        %v826 = vadd.f32 %v475, %v825
        %827 = vmatmul.f32.gmra.mxu0 %v620
        %v828 = vpop.f32.mrf.mxu0
        %v829 = vadd.f32 %v475, %v828
        %830 = vmatmul.f32.gmra.mxu0 %v623
        %v831 = vpop.f32.mrf.mxu0
        %v832 = vadd.f32 %v475, %v831
        %833 = vmatmul.f32.gmra.mxu0 %v626
        %v834 = vpop.f32.mrf.mxu0
        %v835 = vadd.f32 %v475, %v834
        %836 = vmatmul.f32.gmra.mxu0 %v629
        %v837 = vpop.f32.mrf.mxu0
        %v838 = vadd.f32 %v475, %v837
        %839 = vmatmul.f32.gmra.mxu0 %v632
        %v840 = vpop.f32.mrf.mxu0
        %v841 = vadd.f32 %v475, %v840
        %842 = vmatmul.f32.gmra.mxu0 %v635
        %v843 = vpop.f32.mrf.mxu0
        %v844 = vadd.f32 %v475, %v843
        %845 = vmatmul.f32.gmra.mxu0 %v638
        %v846 = vpop.f32.mrf.mxu0
        %v847 = vadd.f32 %v475, %v846
        %848 = vmatmul.f32.gmra.mxu0 %v641
        %v849 = vpop.f32.mrf.mxu0
        %v850 = vadd.f32 %v475, %v849
        %851 = vmatmul.f32.gmra.mxu0 %v644
        %v852 = vpop.f32.mrf.mxu0
        %v853 = vadd.f32 %v475, %v852
        %854 = vmatmul.f32.gmra.mxu0 %v647
        %v855 = vpop.f32.mrf.mxu0
        %v856 = vadd.f32 %v475, %v855
        %857 = vmatmul.f32.gmra.mxu0 %v650
        %v858 = vpop.f32.mrf.mxu0
        %v859 = vadd.f32 %v475, %v858
        %860 = vmatmul.f32.gmra.mxu0 %v653
        %v861 = vpop.f32.mrf.mxu0
        %v862 = vadd.f32 %v475, %v861
        %863 = vmatmul.f32.gmra.mxu0 %v656
        %v864 = vpop.f32.mrf.mxu0
        %v865 = vadd.f32 %v475, %v864
        %866 = vmatmul.f32.gmra.mxu0 %v659
        %v867 = vpop.f32.mrf.mxu0
        %v868 = vadd.f32 %v475, %v867
        %869 = vmatmul.f32.gmra.mxu0 %v662
        %v870 = vpop.f32.mrf.mxu0
        %v871 = vadd.f32 %v475, %v870
        %872 = vmatmul.f32.gmra.mxu0 %v665
        %v873 = vpop.f32.mrf.mxu0
        %v874 = vadd.f32 %v475, %v873
        %875 = vmatmul.f32.gmra.mxu0 %v668
        %v876 = vpop.f32.mrf.mxu0
        %v877 = vadd.f32 %v475, %v876
        %878 = vdwg.mxu0
        %v879 = vmax.f32 %v688, 0.0
        %v880 = vmax.f32 %v691, 0.0
        %v881 = vmax.f32 %v694, 0.0
        %v882 = vmax.f32 %v697, 0.0
        %v883 = vmax.f32 %v700, 0.0
        %v884 = vmax.f32 %v703, 0.0
        %v885 = vmax.f32 %v706, 0.0
        %v886 = vmax.f32 %v709, 0.0
        %v887 = vmax.f32 %v712, 0.0
        %v888 = vmax.f32 %v715, 0.0
        %v889 = vmax.f32 %v718, 0.0
        %v890 = vmax.f32 %v721, 0.0
        %v891 = vmax.f32 %v724, 0.0
        %v892 = vmax.f32 %v727, 0.0
        %v893 = vmax.f32 %v730, 0.0
        %v894 = vmax.f32 %v733, 0.0
        %v895 = vmax.f32 %v736, 0.0
        %v896 = vmax.f32 %v739, 0.0
        %v897 = vmax.f32 %v742, 0.0
        %v898 = vmax.f32 %v745, 0.0
        %v899 = vmax.f32 %v748, 0.0
        %v900 = vmax.f32 %v751, 0.0
        %v901 = vmax.f32 %v754, 0.0
        %v902 = vmax.f32 %v757, 0.0
        %v903 = vmax.f32 %v760, 0.0
        %v904 = vmax.f32 %v763, 0.0
        %v905 = vmax.f32 %v766, 0.0
        %v906 = vmax.f32 %v769, 0.0
        %v907 = vmax.f32 %v772, 0.0
        %v908 = vmax.f32 %v775, 0.0
        %v909 = vmax.f32 %v778, 0.0
        %v910 = vmax.f32 %v781, 0.0
        %v911 = vmax.f32 %v784, 0.0
        %v912 = vmax.f32 %v787, 0.0
        %v913 = vmax.f32 %v790, 0.0
        %v914 = vmax.f32 %v793, 0.0
        %v915 = vmax.f32 %v796, 0.0
        %v916 = vmax.f32 %v799, 0.0
        %v917 = vmax.f32 %v802, 0.0
        %v918 = vmax.f32 %v805, 0.0
        %v919 = vmax.f32 %v808, 0.0
        %v920 = vmax.f32 %v811, 0.0
        %v921 = vmax.f32 %v814, 0.0
        %v922 = vmax.f32 %v817, 0.0
        %v923 = vmax.f32 %v820, 0.0
        %v924 = vmax.f32 %v823, 0.0
        %v925 = vmax.f32 %v826, 0.0
        %v926 = vmax.f32 %v829, 0.0
        %v927 = vmax.f32 %v832, 0.0
        %v928 = vmax.f32 %v835, 0.0
        %v929 = vmax.f32 %v838, 0.0
        %v930 = vmax.f32 %v841, 0.0
        %v931 = vmax.f32 %v844, 0.0
        %v932 = vmax.f32 %v847, 0.0
        %v933 = vmax.f32 %v850, 0.0
        %v934 = vmax.f32 %v853, 0.0
        %v935 = vmax.f32 %v856, 0.0
        %v936 = vmax.f32 %v859, 0.0
        %v937 = vmax.f32 %v862, 0.0
        %v938 = vmax.f32 %v865, 0.0
        %v939 = vmax.f32 %v868, 0.0
        %v940 = vmax.f32 %v871, 0.0
        %v941 = vmax.f32 %v874, 0.0
        %v942 = vmax.f32 %v877, 0.0
        %v943 = vld [vmem:[%s4] sm:$0x1]
        %v944 = vld [vmem:[#allocation2] sm:$0x1]
        %946 = vset.pattern.permute.xlu0 0
        %947 = vperm.xlu0 %946, %v944
        %v948 = vpop.permute.xlu0 %947
        %v950 = vperm.slane %v948, 0
        %v952 = vsel %vm477, %v943, 0
        %v955 = vsel %vm477, %v879, 0
        %v958 = vsel %vm477, %v880, 0
        %v961 = vsel %vm477, %v881, 0
        %v964 = vsel %vm477, %v882, 0
        %v967 = vsel %vm477, %v883, 0
        %v970 = vsel %vm477, %v884, 0
        %v973 = vsel %vm477, %v885, 0
        %v976 = vsel %vm477, %v886, 0
        %v979 = vsel %vm477, %v887, 0
        %v982 = vsel %vm477, %v888, 0
        %v985 = vsel %vm477, %v889, 0
        %v988 = vsel %vm477, %v890, 0
        %v991 = vsel %vm477, %v891, 0
        %v994 = vsel %vm477, %v892, 0
        %v997 = vsel %vm477, %v893, 0
        %v1000 = vsel %vm477, %v894, 0
        %v1003 = vsel %vm477, %v895, 0
        %v1006 = vsel %vm477, %v896, 0
        %v1009 = vsel %vm477, %v897, 0
        %v1012 = vsel %vm477, %v898, 0
        %v1015 = vsel %vm477, %v899, 0
        %v1018 = vsel %vm477, %v900, 0
        %v1021 = vsel %vm477, %v901, 0
        %v1024 = vsel %vm477, %v902, 0
        %v1027 = vsel %vm477, %v903, 0
        %v1030 = vsel %vm477, %v904, 0
        %v1033 = vsel %vm477, %v905, 0
        %v1036 = vsel %vm477, %v906, 0
        %v1039 = vsel %vm477, %v907, 0
        %v1042 = vsel %vm477, %v908, 0
        %v1045 = vsel %vm477, %v909, 0
        %v1048 = vsel %vm477, %v910, 0
        %v1051 = vsel %vm477, %v911, 0
        %v1054 = vsel %vm477, %v912, 0
        %v1057 = vsel %vm477, %v913, 0
        %v1060 = vsel %vm477, %v914, 0
        %v1063 = vsel %vm477, %v915, 0
        %v1066 = vsel %vm477, %v916, 0
        %v1069 = vsel %vm477, %v917, 0
        %v1072 = vsel %vm477, %v918, 0
        %v1075 = vsel %vm477, %v919, 0
        %v1078 = vsel %vm477, %v920, 0
        %v1081 = vsel %vm477, %v921, 0
        %v1084 = vsel %vm477, %v922, 0
        %v1087 = vsel %vm477, %v923, 0
        %v1090 = vsel %vm477, %v924, 0
        %v1093 = vsel %vm477, %v925, 0
        %v1096 = vsel %vm477, %v926, 0
        %v1099 = vsel %vm477, %v927, 0
        %v1102 = vsel %vm477, %v928, 0
        %v1105 = vsel %vm477, %v929, 0
        %v1108 = vsel %vm477, %v930, 0
        %v1111 = vsel %vm477, %v931, 0
        %v1114 = vsel %vm477, %v932, 0
        %v1117 = vsel %vm477, %v933, 0
        %v1120 = vsel %vm477, %v934, 0
        %v1123 = vsel %vm477, %v935, 0
        %v1126 = vsel %vm477, %v936, 0
        %v1129 = vsel %vm477, %v937, 0
        %v1132 = vsel %vm477, %v938, 0
        %v1135 = vsel %vm477, %v939, 0
        %v1138 = vsel %vm477, %v940, 0
        %v1141 = vsel %vm477, %v941, 0
        %v1144 = vsel %vm477, %v942, 0
        %1146 = vmatpush.xpose.msra.mxu0 %v1000
        %1147 = vmatpush.xpose.msra.mxu0 %v997
        %1148 = vmatpush.xpose.msra.mxu0 %v994
        %1149 = vmatpush.xpose.msra.mxu0 %v991
        %1150 = vmatpush.xpose.msra.mxu0 %v988
        %1151 = vmatpush.xpose.msra.mxu0 %v985
        %1152 = vmatpush.xpose.msra.mxu0 %v982
        %1153 = vmatpush.xpose.msra.mxu0 %v979
        %1154 = vmatpush.xpose.msra.mxu0 %v976
        %1155 = vmatpush.xpose.msra.mxu0 %v973
        %1156 = vmatpush.xpose.msra.mxu0 %v970
        %1157 = vmatpush.xpose.msra.mxu0 %v967
        %1158 = vmatpush.xpose.msra.mxu0 %v964
        %1159 = vmatpush.xpose.msra.mxu0 %v961
        %1160 = vmatpush.xpose.msra.mxu0 %v958
        %1161 = vmatpush.xpose.msra.mxu0 %v955
        %1162 = vmatmul.f32.gmra.mxu0 %v952
        %v1163 = vpop.f32.mrf.mxu0
        %v1164 = vadd.f32 %v950, %v1163
        %1165 = vdwg.mxu0
        %1166 = vmatpush.xpose.msra.mxu0 %v1048
        %1167 = vmatpush.xpose.msra.mxu0 %v1045
        %1168 = vmatpush.xpose.msra.mxu0 %v1042
        %1169 = vmatpush.xpose.msra.mxu0 %v1039
        %1170 = vmatpush.xpose.msra.mxu0 %v1036
        %1171 = vmatpush.xpose.msra.mxu0 %v1033
        %1172 = vmatpush.xpose.msra.mxu0 %v1030
        %1173 = vmatpush.xpose.msra.mxu0 %v1027
        %1174 = vmatpush.xpose.msra.mxu0 %v1024
        %1175 = vmatpush.xpose.msra.mxu0 %v1021
        %1176 = vmatpush.xpose.msra.mxu0 %v1018
        %1177 = vmatpush.xpose.msra.mxu0 %v1015
        %1178 = vmatpush.xpose.msra.mxu0 %v1012
        %1179 = vmatpush.xpose.msra.mxu0 %v1009
        %1180 = vmatpush.xpose.msra.mxu0 %v1006
        %1181 = vmatpush.xpose.msra.mxu0 %v1003
        %1182 = vmatmul.f32.gmra.mxu0 %v952
        %v1183 = vpop.f32.mrf.mxu0
        %v1184 = vadd.f32 %v950, %v1183
        %1185 = vdwg.mxu0
        %1186 = vmatpush.xpose.msra.mxu0 %v1096
        %1187 = vmatpush.xpose.msra.mxu0 %v1093
        %1188 = vmatpush.xpose.msra.mxu0 %v1090
        %1189 = vmatpush.xpose.msra.mxu0 %v1087
        %1190 = vmatpush.xpose.msra.mxu0 %v1084
        %1191 = vmatpush.xpose.msra.mxu0 %v1081
        %1192 = vmatpush.xpose.msra.mxu0 %v1078
        %1193 = vmatpush.xpose.msra.mxu0 %v1075
        %1194 = vmatpush.xpose.msra.mxu0 %v1072
        %1195 = vmatpush.xpose.msra.mxu0 %v1069
        %1196 = vmatpush.xpose.msra.mxu0 %v1066
        %1197 = vmatpush.xpose.msra.mxu0 %v1063
        %1198 = vmatpush.xpose.msra.mxu0 %v1060
        %1199 = vmatpush.xpose.msra.mxu0 %v1057
        %1200 = vmatpush.xpose.msra.mxu0 %v1054
        %1201 = vmatpush.xpose.msra.mxu0 %v1051
        %1202 = vmatmul.f32.gmra.mxu0 %v952
        %v1203 = vpop.f32.mrf.mxu0
        %v1204 = vadd.f32 %v950, %v1203
        %1205 = vdwg.mxu0
        %1206 = vmatpush.xpose.msra.mxu0 %v1144
        %1207 = vmatpush.xpose.msra.mxu0 %v1141
        %1208 = vmatpush.xpose.msra.mxu0 %v1138
        %1209 = vmatpush.xpose.msra.mxu0 %v1135
        %1210 = vmatpush.xpose.msra.mxu0 %v1132
        %1211 = vmatpush.xpose.msra.mxu0 %v1129
        %1212 = vmatpush.xpose.msra.mxu0 %v1126
        %1213 = vmatpush.xpose.msra.mxu0 %v1123
        %1214 = vmatpush.xpose.msra.mxu0 %v1120
        %1215 = vmatpush.xpose.msra.mxu0 %v1117
        %1216 = vmatpush.xpose.msra.mxu0 %v1114
        %1217 = vmatpush.xpose.msra.mxu0 %v1111
        %1218 = vmatpush.xpose.msra.mxu0 %v1108
        %1219 = vmatpush.xpose.msra.mxu0 %v1105
        %1220 = vmatpush.xpose.msra.mxu0 %v1102
        %1221 = vmatpush.xpose.msra.mxu0 %v1099
        %1222 = vmatmul.f32.gmra.mxu0 %v952
        %v1223 = vpop.f32.mrf.mxu0
        %v1224 = vadd.f32 %v950, %v1223
        %1225 = vdwg.mxu0
        %v1226 = vxor.u32 %v1164, 2147483648
        %v1227 = vxor.u32 %v1184, 2147483648
        %v1228 = vxor.u32 %v1204, 2147483648
        %v1229 = vxor.u32 %v1224, 2147483648
        %v1230 = vmul.f32 %v1226, 1.442695
        %v1231 = vpow.pop %v1230
        %v1232 = vmul.f32 %v1227, 1.442695
        %v1233 = vpow.pop %v1232
        %v1234 = vmul.f32 %v1228, 1.442695
        %v1235 = vpow.pop %v1234
        %v1236 = vmul.f32 %v1229, 1.442695
        %v1237 = vpow.pop %v1236
        %v1238 = vadd.f32 %v1231, 1.0
        %v1239 = vadd.f32 %v1233, 1.0
        %v1240 = vadd.f32 %v1235, 1.0
        %v1241 = vadd.f32 %v1237, 1.0
        %v1242 = vrcp.pop %v1238
        %v1243 = vmul.f32 %v1238, %v1242
        %v1244 = vsub.f32 1.0, %v1243
        %v1245 = vmul.f32 %v1242, %v1244
        %v1246 = vadd.f32 %v1242, %v1245
        %vm1247 = vweird.f32 %v1238
        %vm1248 = vweird.f32 %v1242
        %vm1249 = vmor %vm1247, %vm1248
        %v1250 = vsel %vm1249, %v1242, %v1246
        %v1251 = vand.u32 2147483647, %v1238
        %vm1252 = vcmp.eq.f32.partialorder %v1251, 8.507059e+37
        %v1253 = vand.u32 %v1238, 2147483648
        %v1254 = vor.u32 1.1754944e-38, %v1253
        %v1255 = vsel %vm1252, %v1254, %v1250
        %v1256 = vmul.f32 1.0, %v1255
        %v1257 = vrcp.pop %v1239
        %v1258 = vmul.f32 %v1239, %v1257
        %v1259 = vsub.f32 1.0, %v1258
        %v1260 = vmul.f32 %v1257, %v1259
        %v1261 = vadd.f32 %v1257, %v1260
        %vm1262 = vweird.f32 %v1239
        %vm1263 = vweird.f32 %v1257
        %vm1264 = vmor %vm1262, %vm1263
        %v1265 = vsel %vm1264, %v1257, %v1261
        %v1266 = vand.u32 2147483647, %v1239
        %vm1267 = vcmp.eq.f32.partialorder %v1266, 8.507059e+37
        %v1268 = vand.u32 %v1239, 2147483648
        %v1269 = vor.u32 1.1754944e-38, %v1268
        %v1270 = vsel %vm1267, %v1269, %v1265
        %v1271 = vmul.f32 1.0, %v1270
        %v1272 = vrcp.pop %v1240
        %v1273 = vmul.f32 %v1240, %v1272
        %v1274 = vsub.f32 1.0, %v1273
        %v1275 = vmul.f32 %v1272, %v1274
        %v1276 = vadd.f32 %v1272, %v1275
        %vm1277 = vweird.f32 %v1240
        %vm1278 = vweird.f32 %v1272
        %vm1279 = vmor %vm1277, %vm1278
        %v1280 = vsel %vm1279, %v1272, %v1276
        %v1281 = vand.u32 2147483647, %v1240
        %vm1282 = vcmp.eq.f32.partialorder %v1281, 8.507059e+37
        %v1283 = vand.u32 %v1240, 2147483648
        %v1284 = vor.u32 1.1754944e-38, %v1283
        %v1285 = vsel %vm1282, %v1284, %v1280
        %v1286 = vmul.f32 1.0, %v1285
        %v1287 = vrcp.pop %v1241
        %v1288 = vmul.f32 %v1241, %v1287
        %v1289 = vsub.f32 1.0, %v1288
        %v1290 = vmul.f32 %v1287, %v1289
        %v1291 = vadd.f32 %v1287, %v1290
        %vm1292 = vweird.f32 %v1241
        %vm1293 = vweird.f32 %v1287
        %vm1294 = vmor %vm1292, %vm1293
        %v1295 = vsel %vm1294, %v1287, %v1291
        %v1296 = vand.u32 2147483647, %v1241
        %vm1297 = vcmp.eq.f32.partialorder %v1296, 8.507059e+37
        %v1298 = vand.u32 %v1241, 2147483648
        %v1299 = vor.u32 1.1754944e-38, %v1298
        %v1300 = vsel %vm1297, %v1299, %v1295
        %v1301 = vmul.f32 1.0, %v1300
        %v1306 = vrot.slane %v1271, 7
        %v1307 = vrot.slane %v1286, 6
        %v1308 = vrot.slane %v1301, 5
        %vm1309 = vcmask 1040384
        %v1310 = vsel %vm1309, %v1256, %v1306
        %vm1311 = vcmask 1042434
        %v1312 = vsel %vm1311, %v1307, %v1308
        %vm1313 = vcmask 1041408
        %v1314 = vsel %vm1313, %v1310, %v1312
        %v1316 = vlaneseq
        %vm1317 = vcmp.ge.s32.totalorder %v1316, 0
        %vm1318 = vcmp.lt.s32.totalorder %v1316, 512
        %vm1319 = vmand %vm1317, %vm1318
        %1320 = vst.msk [vmem:[%s263] sm:$0xf] %vm1319, %v1314
        %s1321 = sand.u32 %s166, 1
        %s1322 = scalar_lea.sflag [#allocation4], %s1321
        %s1323 = sand.u32 %s166, 1
        %s1324 = smul.addr %s1323, 4
        %s1325 = scalar_lea.vmem [#allocation3], %s1324
        // Predicated region
        $region45: #{tpu_custom_call.1} parent=43 // pred_check
          %p1326 = pneg %p176
        $region46: #{tpu_custom_call.1} parent=43 // pred_check_branch
          %1328 = sbr.rel (%p1326) target = $region48
        $region47: #{tpu_custom_call.1} parent=43 // pred_region
          %s1329 = smul.u32 4, %s22
          %1331 = vsyncadd %s1322, 0
          %s1332 = scalar_lea.hbm %s6, %s1329
          %s1334 = sshll.u32 %s1325, 4
          %s1335 = int_to_ptr.vmem [resolvable:$true] %s1334
          %s1336 = sshll.u32 %s1332, 4
          %s1337 = int_to_ptr.hbm [resolvable:$true] %s1336
          %1339 = dma.vmem_to_hbm [thread:$0]  %s1335, 64, %s1337, %s1322
        $region48: #{tpu_custom_call.1} parent=43 // pred_fallthru
          _
      $region44: #{tpu_custom_call.1} parent=5 // pred_fallthru
        _
      %p1340 = scmp.le.s32.totalorder 2, %s17
      // Predicated region
      $region49: #{tpu_custom_call.1} parent=5 // pred_check
        %p1341 = pneg %p1340
      $region50: #{tpu_custom_call.1} parent=5 // pred_check_branch
        %1343 = sbr.rel (%p1341) target = $region52
      $region51: #{tpu_custom_call.1} parent=5 // pred_region
        %s1344 = ssub.s32 %s17, 2
        // Predicated region
        $region53: #{tpu_custom_call.1} parent=51 // pred_check
          %p1345 = pneg %p182
        $region54: #{tpu_custom_call.1} parent=51 // pred_check_branch
          %1347 = sbr.rel (%p1345) target = $region56
        $region55: #{tpu_custom_call.1} parent=51 // pred_region
          %s1348 = sand.u32 %s167, 1
          %s1349 = scalar_lea.sflag [#allocation4], %s1348
          %s1350 = sand.u32 %s167, 1
          %s1351 = smul.addr %s1350, 4
          %s1352 = scalar_lea.vmem [#allocation3], %s1351
          %1354 = dma.done %s1349, 64
        $region56: #{tpu_custom_call.1} parent=51 // pred_fallthru
          _
      $region52: #{tpu_custom_call.1} parent=5 // pred_fallthru
        _
    $region6: #{tpu_custom_call.1} parent=1 // loop_footer
      %s21 = sadd.s32 1, %s17
    $region7: #{tpu_custom_call.1} parent=1 // loop_footer_branch
      %16 = sbr.rel target = $region3
    $region8: #{tpu_custom_call.1} parent=1 // loop_exit
      _
    %1355 = vsyncpa [#allocation4], 1
    %s1356 = scalar_lea.sflag [#allocation4], 1
    %1357 = vsyncpa %s1356, 1

</llo_original>
